<compile_context>
chip_gen: v7x
topology: tpu7x:2x2x1
jax: 0.10.0
libtpu: 0.0.40
codegen_flags: <defaults>
</compile_context>

<pallas_src>
import jax
import jax.numpy as jnp
from jax.experimental import pallas as pl
from jax.experimental.pallas import tpu as pltpu


def glu_ffn_kernel(x_ref, wa_ref, ba_ref, wb_ref, bb_ref, w2_ref, b2_ref,
                   o_ref, acc_ref):
    # x_ref:  (TM, dim)
    # wa_ref/wb_ref: (dim, TN)    ba_ref/bb_ref: (1, TN)
    # w2_ref: (TN, dim)           b2_ref: (1, dim)
    # acc_ref: (TM, dim) f32 accumulator, resident across the hidden axis.
    h_idx = pl.program_id(1)

    @pl.when(h_idx == 0)
    def _():
        acc_ref[...] = jnp.zeros_like(acc_ref)

    x = x_ref[...]  # native dtype -> native-dtype MXU matmul, f32 accumulate
    a = jnp.dot(x, wa_ref[...], preferred_element_type=jnp.float32)
    a = a + ba_ref[...].astype(jnp.float32)
    b = jnp.dot(x, wb_ref[...], preferred_element_type=jnp.float32)
    b = b + bb_ref[...].astype(jnp.float32)

    # GLU in f32 (transcendental on EUP in f32; cast g only for the 2nd matmul)
    g = a * jax.nn.sigmoid(b)

    acc_ref[...] += jnp.dot(g.astype(w2_ref.dtype), w2_ref[...],
                            preferred_element_type=jnp.float32)

    @pl.when(h_idx == pl.num_programs(1) - 1)
    def _():
        o_ref[...] = (acc_ref[...]
                      + b2_ref[...].astype(jnp.float32)).astype(o_ref.dtype)


def _pick_hidden_tile(total, target, align=128):
    """Largest multiple of `align` that divides `total` and is <= target.
    Falls back to `total` (whole hidden dim resident) if none exists, so the
    reduction tiling never pollutes the accumulator with padded garbage."""
    if total <= target:
        return total
    t = (target // align) * align
    while t >= align:
        if total % t == 0:
            return t
        t -= align
    return total


def glu_feed_forward(x, w1, b1, w2, b2, *, tile_m=256, tile_n=512):
    """x: (batch, seq, dim); w1: (dim, 8*dim); b1: (8*dim,);
    w2: (4*dim, dim); b2: (dim,).  Weights are (in, out) transposed vs torch."""
    batch, seq, dim = x.shape
    M = batch * seq
    H = 4 * dim  # width of each GLU half

    x2d = x.reshape(M, dim)
    # PyTorch chunk(2, dim=-1) on the 8*dim output of linear1:
    w_a, w_b = w1[:, :H], w1[:, H:]
    b_a, b_b = b1[:H].reshape(1, H), b1[H:].reshape(1, H)
    b2_2d = b2.reshape(1, dim)

    tm = min(tile_m, M)
    tn = _pick_hidden_tile(H, tile_n)
    grid = (pl.cdiv(M, tm), H // tn)

    # Advisory cost estimate for XLA scheduling around the kernel.
    flops = 2 * M * dim * (8 * dim) + 2 * M * (4 * dim) * dim
    x_item = x.dtype.itemsize
    w_item = w1.dtype.itemsize
    bytes_accessed = (2 * M * dim * x_item                       # x in, y out
                      + (12 * dim * dim + 9 * dim) * w_item)     # weights+bias
    cost = pl.CostEstimate(flops=flops,
                           transcendentals=M * 4 * dim,
                           bytes_accessed=bytes_accessed)

    out2d = pl.pallas_call(
        glu_ffn_kernel,
        out_shape=jax.ShapeDtypeStruct((M, dim), x.dtype),
        grid_spec=pltpu.PrefetchScalarGridSpec(
            num_scalar_prefetch=0,
            grid=grid,
            in_specs=[
                pl.BlockSpec((tm, dim), lambda i, h: (i, 0)),   # x tile
                pl.BlockSpec((dim, tn), lambda i, h: (0, h)),   # W_a slice
                pl.BlockSpec((1, tn),   lambda i, h: (0, h)),   # b_a slice
                pl.BlockSpec((dim, tn), lambda i, h: (0, h)),   # W_b slice
                pl.BlockSpec((1, tn),   lambda i, h: (0, h)),   # b_b slice
                pl.BlockSpec((tn, dim), lambda i, h: (h, 0)),   # W2 slice
                pl.BlockSpec((1, dim),  lambda i, h: (0, 0)),   # b2
            ],
            out_specs=pl.BlockSpec((tm, dim), lambda i, h: (i, 0)),
            scratch_shapes=[pltpu.VMEM((tm, dim), jnp.float32)],
        ),
        compiler_params=pltpu.CompilerParams(
            dimension_semantics=("parallel", "arbitrary"),
            vmem_limit_bytes=64 * 1024 * 1024,
        ),
        cost_estimate=cost,
    )(x2d, w_a, b_a, w_b, b_b, w2, b2_2d)

    return out2d.reshape(batch, seq, dim)


def reference(x, w1, b1, w2, b2):
    h = jnp.einsum("bsd,df->bsf", x, w1) + b1
    a, b = jnp.split(h, 2, axis=-1)
    g = a * jax.nn.sigmoid(b)
    return jnp.einsum("bsf,fd->bsd", g, w2) + b2


def _make_params(key, dim, dtype=jnp.float32):
    k1, k2, k3, k4 = jax.random.split(key, 4)
    bound1 = 1.0 / (dim ** 0.5)
    w1 = jax.random.uniform(k1, (dim, 8 * dim), jnp.float32, -bound1, bound1)
    b1 = jax.random.uniform(k2, (8 * dim,), jnp.float32, -bound1, bound1)
    bound2 = 1.0 / ((4 * dim) ** 0.5)
    w2 = jax.random.uniform(k3, (4 * dim, dim), jnp.float32, -bound2, bound2)
    b2 = jax.random.uniform(k4, (dim,), jnp.float32, -bound2, bound2)
    return (w1.astype(dtype), b1.astype(dtype),
            w2.astype(dtype), b2.astype(dtype))


if __name__ == "__main__":
    key = jax.random.PRNGKey(0)
    kx1, kp1, kx2, kp2 = jax.random.split(key, 4)

    # --- Test 1: small f32, single M tile, single hidden step -------------
    batch, seq, dim = 2, 8, 32
    x = jax.random.normal(kx1, (batch, seq, dim), dtype=jnp.float32)
    w1, b1, w2, b2 = _make_params(kp1, dim, jnp.float32)

    out = glu_feed_forward(x, w1, b1, w2, b2)
    out = jax.block_until_ready(out)
    ref = reference(x, w1, b1, w2, b2)
    assert out.shape == (batch, seq, dim)
    assert jnp.allclose(out, ref, atol=1e-4, rtol=1e-4), "f32 mismatch"

    # bf16 operand path (bf16 MXU matmuls, f32 accumulation / GLU math)
    xb = x.astype(jnp.bfloat16)
    wb1, bb1, wb2, bb2 = (w1.astype(jnp.bfloat16), b1.astype(jnp.bfloat16),
                          w2.astype(jnp.bfloat16), b2.astype(jnp.bfloat16))
    out_bf16 = jax.block_until_ready(glu_feed_forward(xb, wb1, bb1, wb2, bb2))
    assert out_bf16.dtype == jnp.bfloat16
    assert jnp.allclose(out_bf16.astype(jnp.float32), ref,
                        atol=5e-2, rtol=5e-2), "bf16 mismatch"

    # --- Test 2: multi M-tile (with partial last tile) + multi hidden step -
    batch2, seq2, dim2 = 2, 9, 64
    x2 = jax.random.normal(kx2, (batch2, seq2, dim2), dtype=jnp.float32)
    p2 = _make_params(kp2, dim2, jnp.float32)
    out2 = jax.block_until_ready(
        glu_feed_forward(x2, *p2, tile_m=8, tile_n=128))
    ref2 = reference(x2, *p2)
    assert out2.shape == (batch2, seq2, dim2)
    assert jnp.allclose(out2, ref2, atol=1e-4, rtol=1e-4), "tiled mismatch"

    print("KERNEL_OK")
</pallas_src>

<mosaic_0001>
module attributes {stable_mosaic.version = 11 : i64} {
  func.func @glu_ffn_kernel(%arg0: i32, %arg1: i32, %arg2: memref<16x32xf32, #tpu.memory_space<vmem>>, %arg3: memref<32x128xf32, #tpu.memory_space<vmem>>, %arg4: memref<1x128xf32, #tpu.memory_space<vmem>>, %arg5: memref<32x128xf32, #tpu.memory_space<vmem>>, %arg6: memref<1x128xf32, #tpu.memory_space<vmem>>, %arg7: memref<128x32xf32, #tpu.memory_space<vmem>>, %arg8: memref<1x32xf32, #tpu.memory_space<vmem>>, %arg9: memref<16x32xf32, #tpu.memory_space<vmem>>, %arg10: memref<16x32xf32, #tpu.memory_space<vmem>>) attributes {dimension_semantics = [#tpu.dimension_semantics<parallel>, #tpu.dimension_semantics<arbitrary>], iteration_bounds = array<i64: 1, 1>, scalar_prefetch = 0 : i64, scratch_operands = 1 : i64, tpu.core_type = #tpu.core_type<tc>, window_params = [{transform_indices = @transform_0, window_bounds = array<i64: 16, 32>}, {transform_indices = @transform_1, window_bounds = array<i64: 32, 128>}, {transform_indices = @transform_2, window_bounds = array<i64: 1, 128>}, {transform_indices = @transform_3, window_bounds = array<i64: 32, 128>}, {transform_indices = @transform_4, window_bounds = array<i64: 1, 128>}, {transform_indices = @transform_5, window_bounds = array<i64: 128, 32>}, {pipeline_mode = #tpu.pipeline_mode<synchronous>, transform_indices = @transform_6, window_bounds = array<i64: 1, 32>}, {transform_indices = @transform_7, window_bounds = array<i64: 16, 32>}]} {
    %c0_i32 = arith.constant 0 : i32
    %0 = arith.cmpi eq, %arg1, %c0_i32 : i32
    %1 = arith.extui %0 : i1 to i32
    %c0_i32_0 = arith.constant 0 : i32
    %2 = arith.cmpi ne, %1, %c0_i32_0 : i32
    scf.if %2 {
      %cst_21 = arith.constant 0.000000e+00 : f32
      %28 = vector.broadcast %cst_21 : f32 to vector<16x32xf32>
      %c0_22 = arith.constant 0 : index
      %c0_23 = arith.constant 0 : index
      %29 = vector.load %arg10[%c0_22, %c0_23] : memref<16x32xf32, #tpu.memory_space<vmem>>, vector<16x32xf32>
      tpu.vector_store %arg10[%c0_22, %c0_23], %28 {strides = array<i32>} : memref<16x32xf32, #tpu.memory_space<vmem>>, vector<16x32xf32>,
    } else {
    }
    %c0 = arith.constant 0 : index
    %c0_1 = arith.constant 0 : index
    %3 = vector.load %arg2[%c0, %c0_1] : memref<16x32xf32, #tpu.memory_space<vmem>>, vector<16x32xf32>
    %c0_2 = arith.constant 0 : index
    %c0_3 = arith.constant 0 : index
    %4 = vector.load %arg3[%c0_2, %c0_3] : memref<32x128xf32, #tpu.memory_space<vmem>>, vector<32x128xf32>
    %cst = arith.constant dense<0.000000e+00> : vector<16x128xf32>
    %5 = tpu.matmul %3, %4, %cst {dimension_numbers = #tpu.dot_dimension_numbers<[1], [0], [0], [1], [0, 0, 1, 1], [], []>} : vector<16x32xf32>, vector<32x128xf32>, vector<16x128xf32> -> vector<16x128xf32>
    %c0_4 = arith.constant 0 : index
    %c0_5 = arith.constant 0 : index
    %6 = vector.load %arg4[%c0_4, %c0_5] : memref<1x128xf32, #tpu.memory_space<vmem>>, vector<1x128xf32>
    %7 = vector.broadcast %6 : vector<1x128xf32> to vector<16x128xf32>
    %8 = arith.addf %5, %7 : vector<16x128xf32>
    %c0_6 = arith.constant 0 : index
    %c0_7 = arith.constant 0 : index
    %9 = vector.load %arg5[%c0_6, %c0_7] : memref<32x128xf32, #tpu.memory_space<vmem>>, vector<32x128xf32>
    %cst_8 = arith.constant dense<0.000000e+00> : vector<16x128xf32>
    %10 = tpu.matmul %3, %9, %cst_8 {dimension_numbers = #tpu.dot_dimension_numbers<[1], [0], [0], [1], [0, 0, 1, 1], [], []>} : vector<16x32xf32>, vector<32x128xf32>, vector<16x128xf32> -> vector<16x128xf32>
    %c0_9 = arith.constant 0 : index
    %c0_10 = arith.constant 0 : index
    %11 = vector.load %arg6[%c0_9, %c0_10] : memref<1x128xf32, #tpu.memory_space<vmem>>, vector<1x128xf32>
    %12 = vector.broadcast %11 : vector<1x128xf32> to vector<16x128xf32>
    %13 = arith.addf %10, %12 : vector<16x128xf32>
    %14 = arith.negf %13 : vector<16x128xf32>
    %15 = math.exp %14 : vector<16x128xf32>
    %cst_11 = arith.constant 1.000000e+00 : f32
    %16 = vector.broadcast %cst_11 : f32 to vector<16x128xf32>
    %17 = arith.addf %16, %15 : vector<16x128xf32>
    %18 = arith.divf %16, %17 : vector<16x128xf32>
    %19 = arith.mulf %8, %18 : vector<16x128xf32>
    %c0_12 = arith.constant 0 : index
    %c0_13 = arith.constant 0 : index
    %20 = vector.load %arg10[%c0_12, %c0_13] : memref<16x32xf32, #tpu.memory_space<vmem>>, vector<16x32xf32>
    %c0_14 = arith.constant 0 : index
    %c0_15 = arith.constant 0 : index
    %21 = vector.load %arg7[%c0_14, %c0_15] : memref<128x32xf32, #tpu.memory_space<vmem>>, vector<128x32xf32>
    %cst_16 = arith.constant dense<0.000000e+00> : vector<16x32xf32>
    %22 = tpu.matmul %19, %21, %cst_16 {dimension_numbers = #tpu.dot_dimension_numbers<[1], [0], [0], [1], [0, 0, 1, 1], [], []>} : vector<16x128xf32>, vector<128x32xf32>, vector<16x32xf32> -> vector<16x32xf32>
    %23 = arith.addf %20, %22 : vector<16x32xf32>
    %c0_17 = arith.constant 0 : index
    %c0_18 = arith.constant 0 : index
    %24 = vector.load %arg10[%c0_17, %c0_18] : memref<16x32xf32, #tpu.memory_space<vmem>>, vector<16x32xf32>
    tpu.vector_store %arg10[%c0_17, %c0_18], %23 {strides = array<i32>} : memref<16x32xf32, #tpu.memory_space<vmem>>, vector<16x32xf32>,
    %c0_i32_19 = arith.constant 0 : i32
    %25 = arith.cmpi eq, %arg1, %c0_i32_19 : i32
    %26 = arith.extui %25 : i1 to i32
    %c0_i32_20 = arith.constant 0 : i32
    %27 = arith.cmpi ne, %26, %c0_i32_20 : i32
    scf.if %27 {
      %c0_21 = arith.constant 0 : index
      %c0_22 = arith.constant 0 : index
      %28 = vector.load %arg10[%c0_21, %c0_22] : memref<16x32xf32, #tpu.memory_space<vmem>>, vector<16x32xf32>
      %c0_23 = arith.constant 0 : index
      %c0_24 = arith.constant 0 : index
      %29 = vector.load %arg8[%c0_23, %c0_24] : memref<1x32xf32, #tpu.memory_space<vmem>>, vector<1x32xf32>
      %30 = vector.broadcast %29 : vector<1x32xf32> to vector<16x32xf32>
      %31 = arith.addf %28, %30 : vector<16x32xf32>
      %c0_25 = arith.constant 0 : index
      %c0_26 = arith.constant 0 : index
      %32 = vector.load %arg9[%c0_25, %c0_26] : memref<16x32xf32, #tpu.memory_space<vmem>>, vector<16x32xf32>
      tpu.vector_store %arg9[%c0_25, %c0_26], %31 {strides = array<i32>} : memref<16x32xf32, #tpu.memory_space<vmem>>, vector<16x32xf32>,
    } else {
    }
    return
  }
  func.func @transform_0(%arg0: i32, %arg1: i32) -> (i32, i32) {
    %c0_i32 = arith.constant 0 : i32
    %c0_i32_0 = arith.constant 0 : i32
    return %arg0, %c0_i32 : i32, i32
  }
  func.func @transform_1(%arg0: i32, %arg1: i32) -> (i32, i32) {
    %c0_i32 = arith.constant 0 : i32
    %c0_i32_0 = arith.constant 0 : i32
    return %c0_i32, %arg1 : i32, i32
  }
  func.func @transform_2(%arg0: i32, %arg1: i32) -> (i32, i32) {
    %c0_i32 = arith.constant 0 : i32
    %c0_i32_0 = arith.constant 0 : i32
    return %c0_i32, %arg1 : i32, i32
  }
  func.func @transform_3(%arg0: i32, %arg1: i32) -> (i32, i32) {
    %c0_i32 = arith.constant 0 : i32
    %c0_i32_0 = arith.constant 0 : i32
    return %c0_i32, %arg1 : i32, i32
  }
  func.func @transform_4(%arg0: i32, %arg1: i32) -> (i32, i32) {
    %c0_i32 = arith.constant 0 : i32
    %c0_i32_0 = arith.constant 0 : i32
    return %c0_i32, %arg1 : i32, i32
  }
  func.func @transform_5(%arg0: i32, %arg1: i32) -> (i32, i32) {
    %c0_i32 = arith.constant 0 : i32
    %c0_i32_0 = arith.constant 0 : i32
    return %arg1, %c0_i32 : i32, i32
  }
  func.func @transform_6(%arg0: i32, %arg1: i32) -> (i32, i32) {
    %c0_i32 = arith.constant 0 : i32
    %c0_i32_0 = arith.constant 0 : i32
    %c0_i32_1 = arith.constant 0 : i32
    return %c0_i32, %c0_i32_0 : i32, i32
  }
  func.func @transform_7(%arg0: i32, %arg1: i32) -> (i32, i32) {
    %c0_i32 = arith.constant 0 : i32
    %c0_i32_0 = arith.constant 0 : i32
    return %arg0, %c0_i32 : i32, i32
  }
}

</mosaic_0001>

<llo_original>
// kernel: tpu_custom_call.1
$region0: #{tpu_custom_call.1}
  #allocation0 [shape = 'u32[]', space=smem, size = 0x4, offset = 0x4, fixed_abs, tag = 'smem constant byte address 0x4 - core index']
  #allocation1 [shape = 'u32[144,128]{1,0:T(1,128)}', space=vmem, size = 0x12000, scoped, tag = 'internal scratch']
  #allocation2 [shape = 'f32[16,32]{1,0:T(8,128)}', space=vmem, size = 0x2000, scoped, tag = 'scratch operand']
  %s0 = inlined_call_operand.hbm [shape: f32[16,32], index: 0, kind: input, shape index: {}]
  %s1 = inlined_call_operand.hbm [shape: f32[32,128], index: 1, kind: input, shape index: {}]
  %s2 = inlined_call_operand.hbm [shape: f32[1,128], index: 2, kind: input, shape index: {}]
  %s3 = inlined_call_operand.hbm [shape: f32[32,128], index: 3, kind: input, shape index: {}]
  %s4 = inlined_call_operand.hbm [shape: f32[1,128], index: 4, kind: input, shape index: {}]
  %s5 = inlined_call_operand.hbm [shape: f32[128,32], index: 5, kind: input, shape index: {}]
  %s6 = inlined_call_operand.hbm [shape: f32[1,32], index: 6, kind: input, shape index: {}]
  %s7 = inlined_call_operand.hbm [shape: f32[16,32], index: 7, kind: output, shape index: {}]
  %s8 = sld [smem:[#allocation0]]
  $region74: #{tpu_custom_call.1} parent=0
    _
  %s10 = ssub.s32 1, %s8
  %s11 = scalar_select 0, %s10, %s8
  $region1: #{tpu_custom_call.1} parent=0
    #allocation3 [shape = 'u8[8192]{0}', space=vmem, size = 0x2000, scoped, tag = 'input window, operand 0, single buffered']
    #allocation4 [shape = 's32[1]{0}', space=sflag, size = 0x4, scoped, tag = 'scoped memory for tpu_custom_call.1']
    #allocation5 [shape = 's32[1]{0}', space=sflag, size = 0x4, scoped, tag = 'scoped memory for tpu_custom_call.1']
    #allocation6 [shape = 'u8[16384]{0}', space=vmem, size = 0x4000, scoped, tag = 'input window, operand 1, single buffered']
    #allocation7 [shape = 's32[1]{0}', space=sflag, size = 0x4, scoped, tag = 'scoped memory for tpu_custom_call.1']
    #allocation8 [shape = 'u8[512]{0}', space=vmem, size = 0x400, scoped, tag = 'input window, operand 2, single buffered']
    #allocation9 [shape = 'u8[16384]{0}', space=vmem, size = 0x4000, scoped, tag = 'input window, operand 3, single buffered']
    #allocation10 [shape = 's32[1]{0}', space=sflag, size = 0x4, scoped, tag = 'scoped memory for tpu_custom_call.1']
    #allocation11 [shape = 'u8[512]{0}', space=vmem, size = 0x400, scoped, tag = 'input window, operand 4, single buffered']
    #allocation12 [shape = 'u8[65536]{0}', space=vmem, size = 0x10000, scoped, tag = 'input window, operand 5, single buffered']
    #allocation13 [shape = 's32[1]{0}', space=sflag, size = 0x4, scoped, tag = 'scoped memory for tpu_custom_call.1']
    #allocation14 [shape = 'u8[512]{0}', space=vmem, size = 0x400, scoped, tag = 'input window, operand 6, single buffered']
    #allocation15 [shape = 'u8[8192]{0}', space=vmem, size = 0x2000, scoped, tag = 'output window, operand 0, single buffered']
    %12 = vsyncpa [#allocation4], 0
    %13 = vsyncpa [#allocation7], 0
    %14 = vsyncpa [#allocation10], 0
    %15 = vsyncpa [#allocation13], 0
    %16 = vsyncpa [#allocation5], 0
    // Predicated region
    $region2: #{tpu_custom_call.1} parent=1 // pred_check
      _
    $region3: #{tpu_custom_call.1} parent=1 // pred_check_branch
      %18 = sbr.rel (0) target = $region5
    $region4: #{tpu_custom_call.1} parent=1 // pred_region
      %s20 = ssub.s32 256, 256
      %21 = vsyncadd [#allocation4], %s20
      %s22 = sshll.u32 [#allocation3], 4
      %s23 = int_to_ptr.vmem [resolvable:$true] %s22
      %28 = dma.hbm_to_vmem [thread:$0]  %s0, 256, %s23, [#allocation4], 128, 128, 8
    $region5: #{tpu_custom_call.1} parent=1 // pred_fallthru
      _
    // Predicated region
    $region6: #{tpu_custom_call.1} parent=1 // pred_check
      _
    $region7: #{tpu_custom_call.1} parent=1 // pred_check_branch
      %30 = sbr.rel (0) target = $region9
    $region8: #{tpu_custom_call.1} parent=1 // pred_region
      %s32 = ssub.s32 512, 512
      %33 = vsyncadd [#allocation7], %s32
      %s34 = sshll.u32 [#allocation6], 4
      %s35 = int_to_ptr.vmem [resolvable:$true] %s34
      %40 = dma.hbm_to_vmem [thread:$0]  %s1, 512, %s35, [#allocation7], 128, 128, 8
    $region9: #{tpu_custom_call.1} parent=1 // pred_fallthru
      _
    // Predicated region
    $region10: #{tpu_custom_call.1} parent=1 // pred_check
      _
    $region11: #{tpu_custom_call.1} parent=1 // pred_check_branch
      %42 = sbr.rel (0) target = $region13
    $region12: #{tpu_custom_call.1} parent=1 // pred_region
      %s44 = ssub.s32 16, 16
      %45 = vsyncadd [#allocation7], %s44
      %s47 = sshll.u32 [#allocation8], 4
      %s48 = int_to_ptr.vmem [resolvable:$true] %s47
      %50 = dma.hbm_to_vmem [thread:$0]  %s2, 16, %s48, [#allocation7]
    $region13: #{tpu_custom_call.1} parent=1 // pred_fallthru
      _
    // Predicated region
    $region14: #{tpu_custom_call.1} parent=1 // pred_check
      _
    $region15: #{tpu_custom_call.1} parent=1 // pred_check_branch
      %52 = sbr.rel (0) target = $region17
    $region16: #{tpu_custom_call.1} parent=1 // pred_region
      %s54 = ssub.s32 512, 512
      %55 = vsyncadd [#allocation10], %s54
      %s56 = sshll.u32 [#allocation9], 4
      %s57 = int_to_ptr.vmem [resolvable:$true] %s56
      %62 = dma.hbm_to_vmem [thread:$0]  %s3, 512, %s57, [#allocation10], 128, 128, 8
    $region17: #{tpu_custom_call.1} parent=1 // pred_fallthru
      _
    // Predicated region
    $region18: #{tpu_custom_call.1} parent=1 // pred_check
      _
    $region19: #{tpu_custom_call.1} parent=1 // pred_check_branch
      %64 = sbr.rel (0) target = $region21
    $region20: #{tpu_custom_call.1} parent=1 // pred_region
      %s66 = ssub.s32 16, 16
      %67 = vsyncadd [#allocation10], %s66
      %s69 = sshll.u32 [#allocation11], 4
      %s70 = int_to_ptr.vmem [resolvable:$true] %s69
      %72 = dma.hbm_to_vmem [thread:$0]  %s4, 16, %s70, [#allocation10]
    $region21: #{tpu_custom_call.1} parent=1 // pred_fallthru
      _
    // Predicated region
    $region22: #{tpu_custom_call.1} parent=1 // pred_check
      _
    $region23: #{tpu_custom_call.1} parent=1 // pred_check_branch
      %74 = sbr.rel (0) target = $region25
    $region24: #{tpu_custom_call.1} parent=1 // pred_region
      %s76 = ssub.s32 2048, 2048
      %77 = vsyncadd [#allocation13], %s76
      %s78 = sshll.u32 [#allocation12], 4
      %s79 = int_to_ptr.vmem [resolvable:$true] %s78
      %84 = dma.hbm_to_vmem [thread:$0]  %s5, 2048, %s79, [#allocation13], 128, 128, 8
    $region25: #{tpu_custom_call.1} parent=1 // pred_fallthru
      _
    // Predicated region
    $region26: #{tpu_custom_call.1} parent=1 // pred_check
      _
    $region27: #{tpu_custom_call.1} parent=1 // pred_check_branch
      %86 = sbr.rel (0) target = $region29
    $region28: #{tpu_custom_call.1} parent=1 // pred_region
      %s88 = ssub.s32 16, 16
      %89 = vsyncadd [#allocation13], %s88
      %s91 = sshll.u32 [#allocation14], 4
      %s92 = int_to_ptr.vmem [resolvable:$true] %s91
      %94 = dma.hbm_to_vmem [thread:$0]  %s6, 16, %s92, [#allocation13]
    $region29: #{tpu_custom_call.1} parent=1 // pred_fallthru
      _
    // Predicated region
    $region30: #{tpu_custom_call.1} parent=1 // pred_check
      _
    $region31: #{tpu_custom_call.1} parent=1 // pred_check_branch
      %96 = sbr.rel (0) target = $region33
    $region32: #{tpu_custom_call.1} parent=1 // pred_region
      %97 = dma.done [#allocation4], 256
    $region33: #{tpu_custom_call.1} parent=1 // pred_fallthru
      _
    // Predicated region
    $region34: #{tpu_custom_call.1} parent=1 // pred_check
      _
    $region35: #{tpu_custom_call.1} parent=1 // pred_check_branch
      %99 = sbr.rel (0) target = $region37
    $region36: #{tpu_custom_call.1} parent=1 // pred_region
      %100 = dma.done [#allocation7], 512
    $region37: #{tpu_custom_call.1} parent=1 // pred_fallthru
      _
    // Predicated region
    $region38: #{tpu_custom_call.1} parent=1 // pred_check
      _
    $region39: #{tpu_custom_call.1} parent=1 // pred_check_branch
      %102 = sbr.rel (0) target = $region41
    $region40: #{tpu_custom_call.1} parent=1 // pred_region
      %103 = dma.done [#allocation7], 16
    $region41: #{tpu_custom_call.1} parent=1 // pred_fallthru
      _
    // Predicated region
    $region42: #{tpu_custom_call.1} parent=1 // pred_check
      _
    $region43: #{tpu_custom_call.1} parent=1 // pred_check_branch
      %105 = sbr.rel (0) target = $region45
    $region44: #{tpu_custom_call.1} parent=1 // pred_region
      %106 = dma.done [#allocation10], 512
    $region45: #{tpu_custom_call.1} parent=1 // pred_fallthru
      _
    // Predicated region
    $region46: #{tpu_custom_call.1} parent=1 // pred_check
      _
    $region47: #{tpu_custom_call.1} parent=1 // pred_check_branch
      %108 = sbr.rel (0) target = $region49
    $region48: #{tpu_custom_call.1} parent=1 // pred_region
      %109 = dma.done [#allocation10], 16
    $region49: #{tpu_custom_call.1} parent=1 // pred_fallthru
      _
    // Predicated region
    $region50: #{tpu_custom_call.1} parent=1 // pred_check
      _
    $region51: #{tpu_custom_call.1} parent=1 // pred_check_branch
      %111 = sbr.rel (0) target = $region53
    $region52: #{tpu_custom_call.1} parent=1 // pred_region
      %112 = dma.done [#allocation13], 2048
    $region53: #{tpu_custom_call.1} parent=1 // pred_fallthru
      _
    // Predicated region
    $region54: #{tpu_custom_call.1} parent=1 // pred_check
      _
    $region55: #{tpu_custom_call.1} parent=1 // pred_check_branch
      %114 = sbr.rel (0) target = $region57
    $region56: #{tpu_custom_call.1} parent=1 // pred_region
      %115 = dma.done [#allocation13], 16
    $region57: #{tpu_custom_call.1} parent=1 // pred_fallthru
      _
    %p116 = scmp.eq.s32.totalorder 0, 0
    // Predicated region
    $region58: #{tpu_custom_call.1} parent=1 // pred_check
      %p117 = pneg %p116
    $region59: #{tpu_custom_call.1} parent=1 // pred_check_branch
      %119 = sbr.rel (%p117) target = $region61
    $region60: #{tpu_custom_call.1} parent=1 // pred_region
      %vm120 = vcmask 261120
      %121 = vst.msk [vmem:[#allocation2] sm:$0xff] %vm120, 0.0
      %122 = vst.msk [vmem:[#allocation2 + $0x8] sm:$0xff] %vm120, 0.0
    $region61: #{tpu_custom_call.1} parent=1 // pred_fallthru
      _
    %v123 = vld [vmem:[#allocation3] sm:$0xff]
    %v124 = vld [vmem:[#allocation3 + $0x8] sm:$0xff]
    %v125 = vld [vmem:[#allocation6] sm:$0xff]
    %v126 = vld [vmem:[#allocation6 + $0x8] sm:$0xff]
    %v127 = vld [vmem:[#allocation6 + $0x10] sm:$0xff]
    %v128 = vld [vmem:[#allocation6 + $0x18] sm:$0xff]
    %v129 = vld [vmem:[#allocation8] sm:$0x1]
    %v131 = vlaneseq
    %v132 = vshrl.u32 %v131, 7
    %v133 = vsub.s32 0, %v132
    %v134 = vrot.slane %v129, %v133
    %vm136 = vcmask 261120
    %v138 = vsel %vm136, %v123, 0
    %v141 = vsel %vm136, %v124, 0
    %143 = vmatprep.subr.mxu0 0.0
    %144 = vmatpush1.msra.mxu0 %v125
    %145 = vmatprep.subr.mxu0 0.0
    %146 = vmatpush1.msra.mxu0 %v126
    %147 = vmatprep.subr.mxu0 0.0
    %148 = vmatpush1.msra.mxu0 %v127
    %149 = vmatprep.subr.mxu0 0.0
    %150 = vmatpush1.msra.mxu0 %v128
    %151 = vmatprep.subr.mxu0 0.0
    %152 = vmatpush1.msra.mxu0 0.0
    %153 = vmatprep.subr.mxu0 0.0
    %154 = vmatpush1.msra.mxu0 0.0
    %155 = vmatprep.subr.mxu0 0.0
    %156 = vmatpush1.msra.mxu0 0.0
    %157 = vmatprep.subr.mxu0 0.0
    %158 = vmatpush1.msra.mxu0 0.0
    %159 = vmatprep.subr.mxu0 0.0
    %160 = vmatpush1.msra.mxu0 0.0
    %161 = vmatprep.subr.mxu0 0.0
    %162 = vmatpush1.msra.mxu0 0.0
    %163 = vmatprep.subr.mxu0 0.0
    %164 = vmatpush1.msra.mxu0 0.0
    %165 = vmatprep.subr.mxu0 0.0
    %166 = vmatpush1.msra.mxu0 0.0
    %167 = vmatprep.subr.mxu0 0.0
    %168 = vmatpush1.msra.mxu0 0.0
    %169 = vmatprep.subr.mxu0 0.0
    %170 = vmatpush1.msra.mxu0 0.0
    %171 = vmatprep.subr.mxu0 0.0
    %172 = vmatpush1.msra.mxu0 0.0
    %173 = vmatprep.subr.mxu0 0.0
    %174 = vmatpush1.msra.mxu0 0.0
    %175 = vmatprep.subr.mxu0 0.0
    %176 = vmatpush1.msra.mxu0 0.0
    %177 = vmatprep.subr.mxu0 0.0
    %178 = vmatpush1.msra.mxu0 0.0
    %179 = vmatprep.subr.mxu0 0.0
    %180 = vmatpush1.msra.mxu0 0.0
    %181 = vmatprep.subr.mxu0 0.0
    %182 = vmatpush1.msra.mxu0 0.0
    %183 = vmatprep.subr.mxu0 0.0
    %184 = vmatpush1.msra.mxu0 0.0
    %185 = vmatprep.subr.mxu0 0.0
    %186 = vmatpush1.msra.mxu0 0.0
    %187 = vmatprep.subr.mxu0 0.0
    %188 = vmatpush1.msra.mxu0 0.0
    %189 = vmatprep.subr.mxu0 0.0
    %190 = vmatpush1.msra.mxu0 0.0
    %191 = vmatprep.subr.mxu0 0.0
    %192 = vmatpush1.msra.mxu0 0.0
    %193 = vmatprep.subr.mxu0 0.0
    %194 = vmatpush1.msra.mxu0 0.0
    %195 = vmatprep.subr.mxu0 0.0
    %196 = vmatpush1.msra.mxu0 0.0
    %197 = vmatprep.subr.mxu0 0.0
    %198 = vmatpush1.msra.mxu0 0.0
    %199 = vmatprep.subr.mxu0 0.0
    %200 = vmatpush1.msra.mxu0 0.0
    %201 = vmatprep.subr.mxu0 0.0
    %202 = vmatpush1.msra.mxu0 0.0
    %203 = vmatprep.subr.mxu0 0.0
    %204 = vmatpush1.msra.mxu0 0.0
    %205 = vmatprep.subr.mxu0 0.0
    %206 = vmatpush1.msra.mxu0 0.0
    %207 = vmatprep.mubr.f32.mxu0 0.0
    %208 = vmatmul.mubr.f32.gmra.mrb[0].mxu0 %v138
    %v209 = vpop.f32.mrb[0].mxu0
    %v210 = vadd.f32 %v134, %v209
    %v211 = vpop.f32.mrb[0].mxu0
    %212 = vmatprep.mubr.f32.mxu0 0.0
    %213 = vmatmul.mubr.f32.gmra.mrb[0].mxu0 %v141
    %v214 = vpop.f32.mrb[0].mxu0
    %v215 = vadd.f32 %v134, %v214
    %v216 = vpop.f32.mrb[0].mxu0
    %217 = vdwg.mxu0
    %v218 = vld [vmem:[#allocation9] sm:$0xff]
    %v219 = vld [vmem:[#allocation9 + $0x8] sm:$0xff]
    %v220 = vld [vmem:[#allocation9 + $0x10] sm:$0xff]
    %v221 = vld [vmem:[#allocation9 + $0x18] sm:$0xff]
    %v222 = vld [vmem:[#allocation11] sm:$0x1]
    %v224 = vlaneseq
    %v225 = vshrl.u32 %v224, 7
    %v226 = vsub.s32 0, %v225
    %v227 = vrot.slane %v222, %v226
    %229 = vmatprep.subr.mxu0 0.0
    %230 = vmatpush1.msra.mxu0 %v218
    %231 = vmatprep.subr.mxu0 0.0
    %232 = vmatpush1.msra.mxu0 %v219
    %233 = vmatprep.subr.mxu0 0.0
    %234 = vmatpush1.msra.mxu0 %v220
    %235 = vmatprep.subr.mxu0 0.0
    %236 = vmatpush1.msra.mxu0 %v221
    %237 = vmatprep.subr.mxu0 0.0
    %238 = vmatpush1.msra.mxu0 0.0
    %239 = vmatprep.subr.mxu0 0.0
    %240 = vmatpush1.msra.mxu0 0.0
    %241 = vmatprep.subr.mxu0 0.0
    %242 = vmatpush1.msra.mxu0 0.0
    %243 = vmatprep.subr.mxu0 0.0
    %244 = vmatpush1.msra.mxu0 0.0
    %245 = vmatprep.subr.mxu0 0.0
    %246 = vmatpush1.msra.mxu0 0.0
    %247 = vmatprep.subr.mxu0 0.0
    %248 = vmatpush1.msra.mxu0 0.0
    %249 = vmatprep.subr.mxu0 0.0
    %250 = vmatpush1.msra.mxu0 0.0
    %251 = vmatprep.subr.mxu0 0.0
    %252 = vmatpush1.msra.mxu0 0.0
    %253 = vmatprep.subr.mxu0 0.0
    %254 = vmatpush1.msra.mxu0 0.0
    %255 = vmatprep.subr.mxu0 0.0
    %256 = vmatpush1.msra.mxu0 0.0
    %257 = vmatprep.subr.mxu0 0.0
    %258 = vmatpush1.msra.mxu0 0.0
    %259 = vmatprep.subr.mxu0 0.0
    %260 = vmatpush1.msra.mxu0 0.0
    %261 = vmatprep.subr.mxu0 0.0
    %262 = vmatpush1.msra.mxu0 0.0
    %263 = vmatprep.subr.mxu0 0.0
    %264 = vmatpush1.msra.mxu0 0.0
    %265 = vmatprep.subr.mxu0 0.0
    %266 = vmatpush1.msra.mxu0 0.0
    %267 = vmatprep.subr.mxu0 0.0
    %268 = vmatpush1.msra.mxu0 0.0
    %269 = vmatprep.subr.mxu0 0.0
    %270 = vmatpush1.msra.mxu0 0.0
    %271 = vmatprep.subr.mxu0 0.0
    %272 = vmatpush1.msra.mxu0 0.0
    %273 = vmatprep.subr.mxu0 0.0
    %274 = vmatpush1.msra.mxu0 0.0
    %275 = vmatprep.subr.mxu0 0.0
    %276 = vmatpush1.msra.mxu0 0.0
    %277 = vmatprep.subr.mxu0 0.0
    %278 = vmatpush1.msra.mxu0 0.0
    %279 = vmatprep.subr.mxu0 0.0
    %280 = vmatpush1.msra.mxu0 0.0
    %281 = vmatprep.subr.mxu0 0.0
    %282 = vmatpush1.msra.mxu0 0.0
    %283 = vmatprep.subr.mxu0 0.0
    %284 = vmatpush1.msra.mxu0 0.0
    %285 = vmatprep.subr.mxu0 0.0
    %286 = vmatpush1.msra.mxu0 0.0
    %287 = vmatprep.subr.mxu0 0.0
    %288 = vmatpush1.msra.mxu0 0.0
    %289 = vmatprep.subr.mxu0 0.0
    %290 = vmatpush1.msra.mxu0 0.0
    %291 = vmatprep.subr.mxu0 0.0
    %292 = vmatpush1.msra.mxu0 0.0
    %293 = vmatprep.mubr.f32.mxu0 0.0
    %294 = vmatmul.mubr.f32.gmra.mrb[0].mxu0 %v138
    %v295 = vpop.f32.mrb[0].mxu0
    %v296 = vadd.f32 %v227, %v295
    %v297 = vpop.f32.mrb[0].mxu0
    %298 = vmatprep.mubr.f32.mxu0 0.0
    %299 = vmatmul.mubr.f32.gmra.mrb[0].mxu0 %v141
    %v300 = vpop.f32.mrb[0].mxu0
    %v301 = vadd.f32 %v227, %v300
    %v302 = vpop.f32.mrb[0].mxu0
    %303 = vdwg.mxu0
    %v304 = vxor.u32 %v296, 2147483648
    %v305 = vxor.u32 %v301, 2147483648
    %v306 = vmul.f32 %v304, 1.442695
    %v307 = vpow.pop %v306
    %v308 = vmul.f32 %v305, 1.442695
    %v309 = vpow.pop %v308
    %v310 = vadd.f32 %v307, 1.0
    %v311 = vadd.f32 %v309, 1.0
    %v312 = vrcp.pop %v310
    %v313 = vmul.f32 1.0, %v312
    %v314 = vrcp.pop %v311
    %v315 = vmul.f32 1.0, %v314
    %v316 = vmul.f32 %v210, %v313
    %v317 = vmul.f32 %v215, %v315
    %v318 = vld [vmem:[#allocation2] sm:$0xff]
    %v319 = vld [vmem:[#allocation2 + $0x8] sm:$0xff]
    %v320 = vld [vmem:[#allocation12] sm:$0xff]
    %v321 = vld [vmem:[#allocation12 + $0x8] sm:$0xff]
    %v322 = vld [vmem:[#allocation12 + $0x10] sm:$0xff]
    %v323 = vld [vmem:[#allocation12 + $0x18] sm:$0xff]
    %v324 = vld [vmem:[#allocation12 + $0x20] sm:$0xff]
    %v325 = vld [vmem:[#allocation12 + $0x28] sm:$0xff]
    %v326 = vld [vmem:[#allocation12 + $0x30] sm:$0xff]
    %v327 = vld [vmem:[#allocation12 + $0x38] sm:$0xff]
    %v328 = vld [vmem:[#allocation12 + $0x40] sm:$0xff]
    %v329 = vld [vmem:[#allocation12 + $0x48] sm:$0xff]
    %v330 = vld [vmem:[#allocation12 + $0x50] sm:$0xff]
    %v331 = vld [vmem:[#allocation12 + $0x58] sm:$0xff]
    %v332 = vld [vmem:[#allocation12 + $0x60] sm:$0xff]
    %v333 = vld [vmem:[#allocation12 + $0x68] sm:$0xff]
    %v334 = vld [vmem:[#allocation12 + $0x70] sm:$0xff]
    %v335 = vld [vmem:[#allocation12 + $0x78] sm:$0xff]
    %336 = vmatprep.subr.mxu0 0.0
    %337 = vmatpush1.msra.mxu0 %v320
    %338 = vmatprep.subr.mxu0 0.0
    %339 = vmatpush1.msra.mxu0 %v321
    %340 = vmatprep.subr.mxu0 0.0
    %341 = vmatpush1.msra.mxu0 %v322
    %342 = vmatprep.subr.mxu0 0.0
    %343 = vmatpush1.msra.mxu0 %v323
    %344 = vmatprep.subr.mxu0 0.0
    %345 = vmatpush1.msra.mxu0 %v324
    %346 = vmatprep.subr.mxu0 0.0
    %347 = vmatpush1.msra.mxu0 %v325
    %348 = vmatprep.subr.mxu0 0.0
    %349 = vmatpush1.msra.mxu0 %v326
    %350 = vmatprep.subr.mxu0 0.0
    %351 = vmatpush1.msra.mxu0 %v327
    %352 = vmatprep.subr.mxu0 0.0
    %353 = vmatpush1.msra.mxu0 %v328
    %354 = vmatprep.subr.mxu0 0.0
    %355 = vmatpush1.msra.mxu0 %v329
    %356 = vmatprep.subr.mxu0 0.0
    %357 = vmatpush1.msra.mxu0 %v330
    %358 = vmatprep.subr.mxu0 0.0
    %359 = vmatpush1.msra.mxu0 %v331
    %360 = vmatprep.subr.mxu0 0.0
    %361 = vmatpush1.msra.mxu0 %v332
    %362 = vmatprep.subr.mxu0 0.0
    %363 = vmatpush1.msra.mxu0 %v333
    %364 = vmatprep.subr.mxu0 0.0
    %365 = vmatpush1.msra.mxu0 %v334
    %366 = vmatprep.subr.mxu0 0.0
    %367 = vmatpush1.msra.mxu0 %v335
    %368 = vmatprep.subr.mxu0 0.0
    %369 = vmatpush1.msra.mxu0 0.0
    %370 = vmatprep.subr.mxu0 0.0
    %371 = vmatpush1.msra.mxu0 0.0
    %372 = vmatprep.subr.mxu0 0.0
    %373 = vmatpush1.msra.mxu0 0.0
    %374 = vmatprep.subr.mxu0 0.0
    %375 = vmatpush1.msra.mxu0 0.0
    %376 = vmatprep.subr.mxu0 0.0
    %377 = vmatpush1.msra.mxu0 0.0
    %378 = vmatprep.subr.mxu0 0.0
    %379 = vmatpush1.msra.mxu0 0.0
    %380 = vmatprep.subr.mxu0 0.0
    %381 = vmatpush1.msra.mxu0 0.0
    %382 = vmatprep.subr.mxu0 0.0
    %383 = vmatpush1.msra.mxu0 0.0
    %384 = vmatprep.subr.mxu0 0.0
    %385 = vmatpush1.msra.mxu0 0.0
    %386 = vmatprep.subr.mxu0 0.0
    %387 = vmatpush1.msra.mxu0 0.0
    %388 = vmatprep.subr.mxu0 0.0
    %389 = vmatpush1.msra.mxu0 0.0
    %390 = vmatprep.subr.mxu0 0.0
    %391 = vmatpush1.msra.mxu0 0.0
    %392 = vmatprep.subr.mxu0 0.0
    %393 = vmatpush1.msra.mxu0 0.0
    %394 = vmatprep.subr.mxu0 0.0
    %395 = vmatpush1.msra.mxu0 0.0
    %396 = vmatprep.subr.mxu0 0.0
    %397 = vmatpush1.msra.mxu0 0.0
    %398 = vmatprep.subr.mxu0 0.0
    %399 = vmatpush1.msra.mxu0 0.0
    %400 = vmatprep.mubr.f32.mxu0 0.0
    %401 = vmatmul.mubr.f32.gmra.mrb[0].mxu0 %v316
    %v402 = vpop.f32.mrb[0].mxu0
    %v403 = vadd.f32 0.0, %v402
    %v404 = vpop.f32.mrb[0].mxu0
    %405 = vmatprep.mubr.f32.mxu0 0.0
    %406 = vmatmul.mubr.f32.gmra.mrb[0].mxu0 %v317
    %v407 = vpop.f32.mrb[0].mxu0
    %v408 = vadd.f32 0.0, %v407
    %v409 = vpop.f32.mrb[0].mxu0
    %410 = vdwg.mxu0
    %v411 = vadd.f32 %v318, %v403
    %v412 = vadd.f32 %v319, %v408
    %413 = vst.msk [vmem:[#allocation2] sm:$0xff] %vm136, %v411
    %414 = vst.msk [vmem:[#allocation2 + $0x8] sm:$0xff] %vm136, %v412
    // Predicated region
    $region62: #{tpu_custom_call.1} parent=1 // pred_check
      %p415 = pneg %p116
    $region63: #{tpu_custom_call.1} parent=1 // pred_check_branch
      %417 = sbr.rel (%p415) target = $region65
    $region64: #{tpu_custom_call.1} parent=1 // pred_region
      %v418 = vld [vmem:[#allocation2] sm:$0xff]
      %v419 = vld [vmem:[#allocation2 + $0x8] sm:$0xff]
      %v420 = vld [vmem:[#allocation14] sm:$0x1]
      %v422 = vlaneseq
      %v423 = vshrl.u32 %v422, 7
      %v424 = vsub.s32 0, %v423
      %v425 = vrot.slane %v420, %v424
      %v427 = vadd.f32 %v418, %v425
      %v428 = vadd.f32 %v419, %v425
      %429 = vst.msk [vmem:[#allocation15] sm:$0xff] %vm136, %v427
      %430 = vst.msk [vmem:[#allocation15 + $0x8] sm:$0xff] %vm136, %v428
    $region65: #{tpu_custom_call.1} parent=1 // pred_fallthru
      _
    // Predicated region
    $region66: #{tpu_custom_call.1} parent=1 // pred_check
      _
    $region67: #{tpu_custom_call.1} parent=1 // pred_check_branch
      %432 = sbr.rel (0) target = $region69
    $region68: #{tpu_custom_call.1} parent=1 // pred_region
      %s434 = ssub.s32 256, 256
      %435 = vsyncadd [#allocation5], %s434
      %s436 = sshll.u32 [#allocation15], 4
      %s437 = int_to_ptr.vmem [resolvable:$true] %s436
      %442 = dma.vmem_to_hbm [thread:$0]  %s437, 256, %s7, [#allocation5], 128, 128, 8
    $region69: #{tpu_custom_call.1} parent=1 // pred_fallthru
      _
    // Predicated region
    $region70: #{tpu_custom_call.1} parent=1 // pred_check
      _
    $region71: #{tpu_custom_call.1} parent=1 // pred_check_branch
      %444 = sbr.rel (0) target = $region73
    $region72: #{tpu_custom_call.1} parent=1 // pred_region
      %445 = dma.done [#allocation5], 256
    $region73: #{tpu_custom_call.1} parent=1 // pred_fallthru
      _
    %446 = vsyncpa [#allocation4], 1
    %447 = vsyncpa [#allocation7], 1
    %448 = vsyncpa [#allocation10], 1
    %449 = vsyncpa [#allocation13], 1
    %450 = vsyncpa [#allocation5], 1

</llo_original>
